<compile_context>
chip_gen: v7x
topology: tpu7x:2x2x1
jax: 0.10.0
libtpu: 0.0.40
codegen_flags: <defaults>
</compile_context>

<pallas_src>
import functools

import jax
import jax.numpy as jnp
from jax.experimental import pallas as pl
from jax.experimental.pallas import tpu as pltpu

_SUBLANE = 8
_LANE = 128


def _round_up(x, m):
    return (x + m - 1) // m * m


def _lif_kernel(x_ref, vth_ref, out_ref, mem_ref, inp_ref, rst_ref,
                *, alpha, beta, t_chunk, unroll):
    """One grid step: run t_chunk LIF timesteps on a (t_chunk, 8, bc_lane) tile."""
    tj = pl.program_id(1)            # time-chunk index (trailing, "arbitrary")

    # Fresh recurrent state at the start of each BC tile's time sweep.
    @pl.when(tj == 0)
    def _():
        mem_ref[...] = jnp.zeros_like(mem_ref)
        inp_ref[...] = jnp.zeros_like(inp_ref)
        rst_ref[...] = jnp.zeros_like(rst_ref)

    vth = vth_ref[...]               # (8, bc_lane) f32, hoisted out of the loop

    def step(tt, carry):
        mem, inp, rst = carry                            # (8, bc_lane) f32 each
        x_t = x_ref[tt].astype(jnp.float32)              # full (8,128)-tiled slab
        inp = alpha * inp + x_t                          # alpha*input_ + x[:,:,t]
        mem = mem * beta + inp - rst                     # negative_mempot=True
        spike = mem > vth                                # Heaviside (mem - Vth > 0)
        out_ref[tt] = spike.astype(out_ref.dtype)        # full-tile, lane-dense vst
        rst = jnp.where(spike, vth, 0.0)                 # carried reset == spk*Vth
        return mem, inp, rst

    carry0 = (mem_ref[...], inp_ref[...], rst_ref[...])
    mem, inp, rst = jax.lax.fori_loop(0, t_chunk, step, carry0, unroll=unroll)

    mem_ref[...] = mem
    inp_ref[...] = inp
    rst_ref[...] = rst


def spiking_1d_lif_forward(x, vth, alpha=0.75, beta=0.65,
                           t_chunk=256, bc_lane=512):
    """x: (B, C, T) -> spikes (B, C, T) with values 0.0 / 1.0."""
    B, C, T = x.shape
    BC = B * C
    group = _SUBLANE * _LANE                       # 1024 BC elements per (8,128) slab

    bc_pad = _round_up(BC, group)
    lane_total = bc_pad // _SUBLANE                # lane extent of the folded layout
    k = bc_pad // group                            # number of 1024-element BC groups

    # BC-tile lane width: a multiple of 128 that exactly divides lane_total
    # (no partial/garbage-lane boundary tile), capped at the requested width,
    # and forced to yield >=2 BC tiles when possible so both v7x TensorCores
    # get work.  (CORE_PARALLEL on this axis is a further v7x sweep candidate.)
    max_groups = max(1, min(bc_lane // _LANE, k))
    if k >= 2:
        max_groups = min(max_groups, k // 2)
    g = max(d for d in range(1, max_groups + 1) if k % d == 0)
    bc_lane = g * _LANE
    n_bc_tiles = lane_total // bc_lane

    t_chunk = max(1, min(t_chunk, T))
    n_t_chunks = pl.cdiv(T, t_chunk)
    unroll = min(8, t_chunk)

    # (B, C, T) -> (T, 8, bc_pad/8): time-major, B*C folded over sublanes+lanes.
    # transpose + pad + reshape fuse into a single XLA copy.
    x_tbc = jnp.transpose(x, (2, 0, 1)).reshape(T, BC)
    vth_bc = jnp.tile(vth.astype(jnp.float32), B)               # (BC,) = vth[c] at b*C+c
    if bc_pad != BC:
        x_tbc = jnp.pad(x_tbc, ((0, 0), (0, bc_pad - BC)))
        vth_bc = jnp.pad(vth_bc, (0, bc_pad - BC), constant_values=1.0)
    x_in = x_tbc.reshape(T, _SUBLANE, lane_total)
    vth_in = vth_bc.reshape(_SUBLANE, lane_total)

    # Size the VMEM request from the actual tile footprint (double-buffered
    # x + out, vth, 3 f32 state arrays) plus headroom; stays inside v7x 64 MiB.
    itemsize = jnp.dtype(x.dtype).itemsize
    io_tile = t_chunk * _SUBLANE * bc_lane * itemsize
    small = _SUBLANE * bc_lane * 4 * (2 + 3)
    need = 4 * io_tile + small
    vmem_limit = int(min(max(need + need // 4 + (2 << 20), 8 << 20), 56 << 20))

    kernel = functools.partial(
        _lif_kernel, alpha=float(alpha), beta=float(beta),
        t_chunk=t_chunk, unroll=unroll)

    out_tbc = pl.pallas_call(
        kernel,
        # NOTE: spikes are exactly 0/1, so a narrower out dtype (bf16/int8)
        # would halve the write stream (biggest relative win on v5e); kept at
        # x.dtype for strict parity with the PyTorch module.
        out_shape=jax.ShapeDtypeStruct((T, _SUBLANE, lane_total), x.dtype),
        grid_spec=pltpu.PrefetchScalarGridSpec(
            num_scalar_prefetch=0,
            grid=(n_bc_tiles, n_t_chunks),     # (BC tiles, time chunks)
            in_specs=[
                # TODO(synk): sweep pipeline_mode=pl.Buffered(3) on x once HBM-bound.
                pl.BlockSpec((t_chunk, _SUBLANE, bc_lane), lambda i, j: (j, 0, i)),
                pl.BlockSpec((_SUBLANE, bc_lane), lambda i, j: (0, i)),
            ],
            out_specs=pl.BlockSpec((t_chunk, _SUBLANE, bc_lane),
                                   lambda i, j: (j, 0, i)),
            scratch_shapes=[
                pltpu.VMEM((_SUBLANE, bc_lane), jnp.float32),   # mem
                pltpu.VMEM((_SUBLANE, bc_lane), jnp.float32),   # input_
                pltpu.VMEM((_SUBLANE, bc_lane), jnp.float32),   # rst (= spk*Vth)
            ],
        ),
        compiler_params=pltpu.CompilerParams(
            # BC tiles are independent recurrences -> shard across TensorCores;
            # the time axis carries recurrent state -> "arbitrary".
            dimension_semantics=("parallel", "arbitrary"),
            vmem_limit_bytes=vmem_limit,
        ),
    )(x_in, vth_in)

    out = out_tbc.reshape(T, bc_pad)[:, :BC].reshape(T, B, C)
    return jnp.transpose(out, (1, 2, 0))            # back to PyTorch (B, C, T)


def _reference(x, vth, alpha=0.75, beta=0.65):
    """Pure-JAX reference mirroring the PyTorch loop."""
    B, C, T = x.shape

    def step(carry, x_t):
        mem, inp, spk = carry
        rst = spk * vth[None, :]
        inp = alpha * inp + x_t
        mem = mem * beta + inp - rst
        spk = (mem - vth[None, :] > 0).astype(x.dtype)
        return (mem, inp, spk), spk

    zeros = jnp.zeros((B, C), x.dtype)
    _, spk_rec = jax.lax.scan(step, (zeros, zeros, zeros),
                              jnp.transpose(x, (2, 0, 1)))   # (T, B, C)
    return jnp.transpose(spk_rec, (1, 2, 0))


if __name__ == "__main__":
    key = jax.random.PRNGKey(0)

    # Small shapes consistent with the module: batch=2, channels=16, nb_steps=8.
    B, C, T = 2, 16, 8
    x = jax.random.normal(key, (B, C, T), dtype=jnp.float32)
    vth = jnp.ones((C,), dtype=jnp.float32)          # Vth = ones(channels)

    out = spiking_1d_lif_forward(x, vth, alpha=0.75, beta=0.65)
    out = jax.block_until_ready(out)
    ref = _reference(x, vth, alpha=0.75, beta=0.65)
    assert out.shape == (B, C, T)
    assert jnp.allclose(out, ref), "Pallas output mismatch vs reference"

    # Exercise BC tiling (2 tiles), BC padding and a partial trailing time chunk.
    B2, C2, T2 = 2, 600, 19
    x2 = jax.random.normal(jax.random.PRNGKey(1), (B2, C2, T2), dtype=jnp.float32)
    vth2 = jnp.ones((C2,), dtype=jnp.float32)
    out2 = jax.block_until_ready(
        spiking_1d_lif_forward(x2, vth2, t_chunk=8, bc_lane=256))
    ref2 = _reference(x2, vth2)
    assert out2.shape == (B2, C2, T2)
    assert jnp.allclose(out2, ref2), "Pallas output mismatch vs reference (tiled)"

    print("KERNEL_OK")
</pallas_src>

<mosaic_0001>
module attributes {stable_mosaic.version = 11 : i64} {
  func.func @_lif_kernel(%arg0: i32, %arg1: i32, %arg2: memref<8x8x128xf32, #tpu.memory_space<vmem>>, %arg3: memref<8x128xf32, #tpu.memory_space<vmem>>, %arg4: memref<8x8x128xf32, #tpu.memory_space<vmem>>, %arg5: memref<8x128xf32, #tpu.memory_space<vmem>>, %arg6: memref<8x128xf32, #tpu.memory_space<vmem>>, %arg7: memref<8x128xf32, #tpu.memory_space<vmem>>) attributes {dimension_semantics = [#tpu.dimension_semantics<parallel>, #tpu.dimension_semantics<arbitrary>], iteration_bounds = array<i64: 1, 1>, scalar_prefetch = 0 : i64, scratch_operands = 3 : i64, tpu.core_type = #tpu.core_type<tc>, window_params = [{transform_indices = @transform_0, window_bounds = array<i64: 8, 8, 128>}, {transform_indices = @transform_1, window_bounds = array<i64: 8, 128>}, {transform_indices = @transform_2, window_bounds = array<i64: 8, 8, 128>}]} {
    %c0_i32 = arith.constant 0 : i32
    %0 = arith.cmpi eq, %arg1, %c0_i32 : i32
    %1 = arith.extui %0 : i1 to i32
    %c0_i32_0 = arith.constant 0 : i32
    %2 = arith.cmpi ne, %1, %c0_i32_0 : i32
    scf.if %2 {
      %cst_70 = arith.constant 0.000000e+00 : f32
      %162 = vector.broadcast %cst_70 : f32 to vector<8x128xf32>
      %c0_71 = arith.constant 0 : index
      %c0_72 = arith.constant 0 : index
      %163 = vector.load %arg5[%c0_71, %c0_72] : memref<8x128xf32, #tpu.memory_space<vmem>>, vector<8x128xf32>
      tpu.vector_store %arg5[%c0_71, %c0_72], %162 {strides = array<i32>} : memref<8x128xf32, #tpu.memory_space<vmem>>, vector<8x128xf32>,
      %cst_73 = arith.constant 0.000000e+00 : f32
      %164 = vector.broadcast %cst_73 : f32 to vector<8x128xf32>
      %c0_74 = arith.constant 0 : index
      %c0_75 = arith.constant 0 : index
      %165 = vector.load %arg6[%c0_74, %c0_75] : memref<8x128xf32, #tpu.memory_space<vmem>>, vector<8x128xf32>
      tpu.vector_store %arg6[%c0_74, %c0_75], %164 {strides = array<i32>} : memref<8x128xf32, #tpu.memory_space<vmem>>, vector<8x128xf32>,
      %cst_76 = arith.constant 0.000000e+00 : f32
      %166 = vector.broadcast %cst_76 : f32 to vector<8x128xf32>
      %c0_77 = arith.constant 0 : index
      %c0_78 = arith.constant 0 : index
      %167 = vector.load %arg7[%c0_77, %c0_78] : memref<8x128xf32, #tpu.memory_space<vmem>>, vector<8x128xf32>
      tpu.vector_store %arg7[%c0_77, %c0_78], %166 {strides = array<i32>} : memref<8x128xf32, #tpu.memory_space<vmem>>, vector<8x128xf32>,
    } else {
    }
    %c0 = arith.constant 0 : index
    %c0_1 = arith.constant 0 : index
    %3 = vector.load %arg3[%c0, %c0_1] : memref<8x128xf32, #tpu.memory_space<vmem>>, vector<8x128xf32>
    %c0_2 = arith.constant 0 : index
    %c0_3 = arith.constant 0 : index
    %4 = vector.load %arg5[%c0_2, %c0_3] : memref<8x128xf32, #tpu.memory_space<vmem>>, vector<8x128xf32>
    %c0_4 = arith.constant 0 : index
    %c0_5 = arith.constant 0 : index
    %5 = vector.load %arg6[%c0_4, %c0_5] : memref<8x128xf32, #tpu.memory_space<vmem>>, vector<8x128xf32>
    %c0_6 = arith.constant 0 : index
    %c0_7 = arith.constant 0 : index
    %6 = vector.load %arg7[%c0_6, %c0_7] : memref<8x128xf32, #tpu.memory_space<vmem>>, vector<8x128xf32>
    %c0_i32_8 = arith.constant 0 : i32
    %7 = arith.index_cast %c0_i32_8 : i32 to index
    %c0_9 = arith.constant 0 : index
    %c0_10 = arith.constant 0 : index
    %8 = vector.load %arg2[%7, %c0_9, %c0_10] : memref<8x8x128xf32, #tpu.memory_space<vmem>>, vector<1x8x128xf32>
    %9 = vector.shape_cast %8 : vector<1x8x128xf32> to vector<8x128xf32>
    %cst = arith.constant 7.500000e-01 : f32
    %10 = vector.broadcast %cst : f32 to vector<8x128xf32>
    %11 = arith.mulf %10, %5 : vector<8x128xf32>
    %12 = arith.addf %11, %9 : vector<8x128xf32>
    %cst_11 = arith.constant 6.500000e-01 : f32
    %13 = vector.broadcast %cst_11 : f32 to vector<8x128xf32>
    %14 = arith.mulf %4, %13 : vector<8x128xf32>
    %15 = arith.addf %14, %12 : vector<8x128xf32>
    %16 = arith.subf %15, %6 : vector<8x128xf32>
    %17 = arith.cmpf ogt, %16, %3 : vector<8x128xf32>
    %18 = arith.extui %17 : vector<8x128xi1> to vector<8x128xi32>
    %19 = arith.sitofp %18 : vector<8x128xi32> to vector<8x128xf32>
    %20 = arith.index_cast %c0_i32_8 : i32 to index
    %c0_12 = arith.constant 0 : index
    %c0_13 = arith.constant 0 : index
    %21 = vector.load %arg4[%20, %c0_12, %c0_13] : memref<8x8x128xf32, #tpu.memory_space<vmem>>, vector<1x8x128xf32>
    %22 = vector.shape_cast %21 : vector<1x8x128xf32> to vector<8x128xf32>
    %23 = vector.shape_cast %19 : vector<8x128xf32> to vector<1x8x128xf32>
    tpu.vector_store %arg4[%20, %c0_12, %c0_13], %23 {strides = array<i32>} : memref<8x8x128xf32, #tpu.memory_space<vmem>>, vector<1x8x128xf32>,
    %cst_14 = arith.constant 0.000000e+00 : f32
    %24 = vector.broadcast %cst_14 : f32 to vector<8x128xf32>
    %25 = arith.select %17, %3, %24 : vector<8x128xi1>, vector<8x128xf32>
    %c1_i32 = arith.constant 1 : i32
    %26 = arith.index_cast %c1_i32 : i32 to index
    %c0_15 = arith.constant 0 : index
    %c0_16 = arith.constant 0 : index
    %27 = vector.load %arg2[%26, %c0_15, %c0_16] : memref<8x8x128xf32, #tpu.memory_space<vmem>>, vector<1x8x128xf32>
    %28 = vector.shape_cast %27 : vector<1x8x128xf32> to vector<8x128xf32>
    %cst_17 = arith.constant 7.500000e-01 : f32
    %29 = vector.broadcast %cst_17 : f32 to vector<8x128xf32>
    %30 = arith.mulf %29, %12 : vector<8x128xf32>
    %31 = arith.addf %30, %28 : vector<8x128xf32>
    %cst_18 = arith.constant 6.500000e-01 : f32
    %32 = vector.broadcast %cst_18 : f32 to vector<8x128xf32>
    %33 = arith.mulf %16, %32 : vector<8x128xf32>
    %34 = arith.addf %33, %31 : vector<8x128xf32>
    %35 = arith.subf %34, %25 : vector<8x128xf32>
    %36 = arith.cmpf ogt, %35, %3 : vector<8x128xf32>
    %37 = arith.extui %36 : vector<8x128xi1> to vector<8x128xi32>
    %38 = arith.sitofp %37 : vector<8x128xi32> to vector<8x128xf32>
    %39 = arith.index_cast %c1_i32 : i32 to index
    %c0_19 = arith.constant 0 : index
    %c0_20 = arith.constant 0 : index
    %40 = vector.load %arg4[%39, %c0_19, %c0_20] : memref<8x8x128xf32, #tpu.memory_space<vmem>>, vector<1x8x128xf32>
    %41 = vector.shape_cast %40 : vector<1x8x128xf32> to vector<8x128xf32>
    %42 = vector.shape_cast %38 : vector<8x128xf32> to vector<1x8x128xf32>
    tpu.vector_store %arg4[%39, %c0_19, %c0_20], %42 {strides = array<i32>} : memref<8x8x128xf32, #tpu.memory_space<vmem>>, vector<1x8x128xf32>,
    %cst_21 = arith.constant 0.000000e+00 : f32
    %43 = vector.broadcast %cst_21 : f32 to vector<8x128xf32>
    %44 = arith.select %36, %3, %43 : vector<8x128xi1>, vector<8x128xf32>
    %c2_i32 = arith.constant 2 : i32
    %45 = arith.index_cast %c2_i32 : i32 to index
    %c0_22 = arith.constant 0 : index
    %c0_23 = arith.constant 0 : index
    %46 = vector.load %arg2[%45, %c0_22, %c0_23] : memref<8x8x128xf32, #tpu.memory_space<vmem>>, vector<1x8x128xf32>
    %47 = vector.shape_cast %46 : vector<1x8x128xf32> to vector<8x128xf32>
    %cst_24 = arith.constant 7.500000e-01 : f32
    %48 = vector.broadcast %cst_24 : f32 to vector<8x128xf32>
    %49 = arith.mulf %48, %31 : vector<8x128xf32>
    %50 = arith.addf %49, %47 : vector<8x128xf32>
    %cst_25 = arith.constant 6.500000e-01 : f32
    %51 = vector.broadcast %cst_25 : f32 to vector<8x128xf32>
    %52 = arith.mulf %35, %51 : vector<8x128xf32>
    %53 = arith.addf %52, %50 : vector<8x128xf32>
    %54 = arith.subf %53, %44 : vector<8x128xf32>
    %55 = arith.cmpf ogt, %54, %3 : vector<8x128xf32>
    %56 = arith.extui %55 : vector<8x128xi1> to vector<8x128xi32>
    %57 = arith.sitofp %56 : vector<8x128xi32> to vector<8x128xf32>
    %58 = arith.index_cast %c2_i32 : i32 to index
    %c0_26 = arith.constant 0 : index
    %c0_27 = arith.constant 0 : index
    %59 = vector.load %arg4[%58, %c0_26, %c0_27] : memref<8x8x128xf32, #tpu.memory_space<vmem>>, vector<1x8x128xf32>
    %60 = vector.shape_cast %59 : vector<1x8x128xf32> to vector<8x128xf32>
    %61 = vector.shape_cast %57 : vector<8x128xf32> to vector<1x8x128xf32>
    tpu.vector_store %arg4[%58, %c0_26, %c0_27], %61 {strides = array<i32>} : memref<8x8x128xf32, #tpu.memory_space<vmem>>, vector<1x8x128xf32>,
    %cst_28 = arith.constant 0.000000e+00 : f32
    %62 = vector.broadcast %cst_28 : f32 to vector<8x128xf32>
    %63 = arith.select %55, %3, %62 : vector<8x128xi1>, vector<8x128xf32>
    %c3_i32 = arith.constant 3 : i32
    %64 = arith.index_cast %c3_i32 : i32 to index
    %c0_29 = arith.constant 0 : index
    %c0_30 = arith.constant 0 : index
    %65 = vector.load %arg2[%64, %c0_29, %c0_30] : memref<8x8x128xf32, #tpu.memory_space<vmem>>, vector<1x8x128xf32>
    %66 = vector.shape_cast %65 : vector<1x8x128xf32> to vector<8x128xf32>
    %cst_31 = arith.constant 7.500000e-01 : f32
    %67 = vector.broadcast %cst_31 : f32 to vector<8x128xf32>
    %68 = arith.mulf %67, %50 : vector<8x128xf32>
    %69 = arith.addf %68, %66 : vector<8x128xf32>
    %cst_32 = arith.constant 6.500000e-01 : f32
    %70 = vector.broadcast %cst_32 : f32 to vector<8x128xf32>
    %71 = arith.mulf %54, %70 : vector<8x128xf32>
    %72 = arith.addf %71, %69 : vector<8x128xf32>
    %73 = arith.subf %72, %63 : vector<8x128xf32>
    %74 = arith.cmpf ogt, %73, %3 : vector<8x128xf32>
    %75 = arith.extui %74 : vector<8x128xi1> to vector<8x128xi32>
    %76 = arith.sitofp %75 : vector<8x128xi32> to vector<8x128xf32>
    %77 = arith.index_cast %c3_i32 : i32 to index
    %c0_33 = arith.constant 0 : index
    %c0_34 = arith.constant 0 : index
    %78 = vector.load %arg4[%77, %c0_33, %c0_34] : memref<8x8x128xf32, #tpu.memory_space<vmem>>, vector<1x8x128xf32>
    %79 = vector.shape_cast %78 : vector<1x8x128xf32> to vector<8x128xf32>
    %80 = vector.shape_cast %76 : vector<8x128xf32> to vector<1x8x128xf32>
    tpu.vector_store %arg4[%77, %c0_33, %c0_34], %80 {strides = array<i32>} : memref<8x8x128xf32, #tpu.memory_space<vmem>>, vector<1x8x128xf32>,
    %cst_35 = arith.constant 0.000000e+00 : f32
    %81 = vector.broadcast %cst_35 : f32 to vector<8x128xf32>
    %82 = arith.select %74, %3, %81 : vector<8x128xi1>, vector<8x128xf32>
    %c4_i32 = arith.constant 4 : i32
    %83 = arith.index_cast %c4_i32 : i32 to index
    %c0_36 = arith.constant 0 : index
    %c0_37 = arith.constant 0 : index
    %84 = vector.load %arg2[%83, %c0_36, %c0_37] : memref<8x8x128xf32, #tpu.memory_space<vmem>>, vector<1x8x128xf32>
    %85 = vector.shape_cast %84 : vector<1x8x128xf32> to vector<8x128xf32>
    %cst_38 = arith.constant 7.500000e-01 : f32
    %86 = vector.broadcast %cst_38 : f32 to vector<8x128xf32>
    %87 = arith.mulf %86, %69 : vector<8x128xf32>
    %88 = arith.addf %87, %85 : vector<8x128xf32>
    %cst_39 = arith.constant 6.500000e-01 : f32
    %89 = vector.broadcast %cst_39 : f32 to vector<8x128xf32>
    %90 = arith.mulf %73, %89 : vector<8x128xf32>
    %91 = arith.addf %90, %88 : vector<8x128xf32>
    %92 = arith.subf %91, %82 : vector<8x128xf32>
    %93 = arith.cmpf ogt, %92, %3 : vector<8x128xf32>
    %94 = arith.extui %93 : vector<8x128xi1> to vector<8x128xi32>
    %95 = arith.sitofp %94 : vector<8x128xi32> to vector<8x128xf32>
    %96 = arith.index_cast %c4_i32 : i32 to index
    %c0_40 = arith.constant 0 : index
    %c0_41 = arith.constant 0 : index
    %97 = vector.load %arg4[%96, %c0_40, %c0_41] : memref<8x8x128xf32, #tpu.memory_space<vmem>>, vector<1x8x128xf32>
    %98 = vector.shape_cast %97 : vector<1x8x128xf32> to vector<8x128xf32>
    %99 = vector.shape_cast %95 : vector<8x128xf32> to vector<1x8x128xf32>
    tpu.vector_store %arg4[%96, %c0_40, %c0_41], %99 {strides = array<i32>} : memref<8x8x128xf32, #tpu.memory_space<vmem>>, vector<1x8x128xf32>,
    %cst_42 = arith.constant 0.000000e+00 : f32
    %100 = vector.broadcast %cst_42 : f32 to vector<8x128xf32>
    %101 = arith.select %93, %3, %100 : vector<8x128xi1>, vector<8x128xf32>
    %c5_i32 = arith.constant 5 : i32
    %102 = arith.index_cast %c5_i32 : i32 to index
    %c0_43 = arith.constant 0 : index
    %c0_44 = arith.constant 0 : index
    %103 = vector.load %arg2[%102, %c0_43, %c0_44] : memref<8x8x128xf32, #tpu.memory_space<vmem>>, vector<1x8x128xf32>
    %104 = vector.shape_cast %103 : vector<1x8x128xf32> to vector<8x128xf32>
    %cst_45 = arith.constant 7.500000e-01 : f32
    %105 = vector.broadcast %cst_45 : f32 to vector<8x128xf32>
    %106 = arith.mulf %105, %88 : vector<8x128xf32>
    %107 = arith.addf %106, %104 : vector<8x128xf32>
    %cst_46 = arith.constant 6.500000e-01 : f32
    %108 = vector.broadcast %cst_46 : f32 to vector<8x128xf32>
    %109 = arith.mulf %92, %108 : vector<8x128xf32>
    %110 = arith.addf %109, %107 : vector<8x128xf32>
    %111 = arith.subf %110, %101 : vector<8x128xf32>
    %112 = arith.cmpf ogt, %111, %3 : vector<8x128xf32>
    %113 = arith.extui %112 : vector<8x128xi1> to vector<8x128xi32>
    %114 = arith.sitofp %113 : vector<8x128xi32> to vector<8x128xf32>
    %115 = arith.index_cast %c5_i32 : i32 to index
    %c0_47 = arith.constant 0 : index
    %c0_48 = arith.constant 0 : index
    %116 = vector.load %arg4[%115, %c0_47, %c0_48] : memref<8x8x128xf32, #tpu.memory_space<vmem>>, vector<1x8x128xf32>
    %117 = vector.shape_cast %116 : vector<1x8x128xf32> to vector<8x128xf32>
    %118 = vector.shape_cast %114 : vector<8x128xf32> to vector<1x8x128xf32>
    tpu.vector_store %arg4[%115, %c0_47, %c0_48], %118 {strides = array<i32>} : memref<8x8x128xf32, #tpu.memory_space<vmem>>, vector<1x8x128xf32>,
    %cst_49 = arith.constant 0.000000e+00 : f32
    %119 = vector.broadcast %cst_49 : f32 to vector<8x128xf32>
    %120 = arith.select %112, %3, %119 : vector<8x128xi1>, vector<8x128xf32>
    %c6_i32 = arith.constant 6 : i32
    %121 = arith.index_cast %c6_i32 : i32 to index
    %c0_50 = arith.constant 0 : index
    %c0_51 = arith.constant 0 : index
    %122 = vector.load %arg2[%121, %c0_50, %c0_51] : memref<8x8x128xf32, #tpu.memory_space<vmem>>, vector<1x8x128xf32>
    %123 = vector.shape_cast %122 : vector<1x8x128xf32> to vector<8x128xf32>
    %cst_52 = arith.constant 7.500000e-01 : f32
    %124 = vector.broadcast %cst_52 : f32 to vector<8x128xf32>
    %125 = arith.mulf %124, %107 : vector<8x128xf32>
    %126 = arith.addf %125, %123 : vector<8x128xf32>
    %cst_53 = arith.constant 6.500000e-01 : f32
    %127 = vector.broadcast %cst_53 : f32 to vector<8x128xf32>
    %128 = arith.mulf %111, %127 : vector<8x128xf32>
    %129 = arith.addf %128, %126 : vector<8x128xf32>
    %130 = arith.subf %129, %120 : vector<8x128xf32>
    %131 = arith.cmpf ogt, %130, %3 : vector<8x128xf32>
    %132 = arith.extui %131 : vector<8x128xi1> to vector<8x128xi32>
    %133 = arith.sitofp %132 : vector<8x128xi32> to vector<8x128xf32>
    %134 = arith.index_cast %c6_i32 : i32 to index
    %c0_54 = arith.constant 0 : index
    %c0_55 = arith.constant 0 : index
    %135 = vector.load %arg4[%134, %c0_54, %c0_55] : memref<8x8x128xf32, #tpu.memory_space<vmem>>, vector<1x8x128xf32>
    %136 = vector.shape_cast %135 : vector<1x8x128xf32> to vector<8x128xf32>
    %137 = vector.shape_cast %133 : vector<8x128xf32> to vector<1x8x128xf32>
    tpu.vector_store %arg4[%134, %c0_54, %c0_55], %137 {strides = array<i32>} : memref<8x8x128xf32, #tpu.memory_space<vmem>>, vector<1x8x128xf32>,
    %cst_56 = arith.constant 0.000000e+00 : f32
    %138 = vector.broadcast %cst_56 : f32 to vector<8x128xf32>
    %139 = arith.select %131, %3, %138 : vector<8x128xi1>, vector<8x128xf32>
    %c7_i32 = arith.constant 7 : i32
    %140 = arith.index_cast %c7_i32 : i32 to index
    %c0_57 = arith.constant 0 : index
    %c0_58 = arith.constant 0 : index
    %141 = vector.load %arg2[%140, %c0_57, %c0_58] : memref<8x8x128xf32, #tpu.memory_space<vmem>>, vector<1x8x128xf32>
    %142 = vector.shape_cast %141 : vector<1x8x128xf32> to vector<8x128xf32>
    %cst_59 = arith.constant 7.500000e-01 : f32
    %143 = vector.broadcast %cst_59 : f32 to vector<8x128xf32>
    %144 = arith.mulf %143, %126 : vector<8x128xf32>
    %145 = arith.addf %144, %142 : vector<8x128xf32>
    %cst_60 = arith.constant 6.500000e-01 : f32
    %146 = vector.broadcast %cst_60 : f32 to vector<8x128xf32>
    %147 = arith.mulf %130, %146 : vector<8x128xf32>
    %148 = arith.addf %147, %145 : vector<8x128xf32>
    %149 = arith.subf %148, %139 : vector<8x128xf32>
    %150 = arith.cmpf ogt, %149, %3 : vector<8x128xf32>
    %151 = arith.extui %150 : vector<8x128xi1> to vector<8x128xi32>
    %152 = arith.sitofp %151 : vector<8x128xi32> to vector<8x128xf32>
    %153 = arith.index_cast %c7_i32 : i32 to index
    %c0_61 = arith.constant 0 : index
    %c0_62 = arith.constant 0 : index
    %154 = vector.load %arg4[%153, %c0_61, %c0_62] : memref<8x8x128xf32, #tpu.memory_space<vmem>>, vector<1x8x128xf32>
    %155 = vector.shape_cast %154 : vector<1x8x128xf32> to vector<8x128xf32>
    %156 = vector.shape_cast %152 : vector<8x128xf32> to vector<1x8x128xf32>
    tpu.vector_store %arg4[%153, %c0_61, %c0_62], %156 {strides = array<i32>} : memref<8x8x128xf32, #tpu.memory_space<vmem>>, vector<1x8x128xf32>,
    %cst_63 = arith.constant 0.000000e+00 : f32
    %157 = vector.broadcast %cst_63 : f32 to vector<8x128xf32>
    %158 = arith.select %150, %3, %157 : vector<8x128xi1>, vector<8x128xf32>
    %c8_i32 = arith.constant 8 : i32
    %c0_64 = arith.constant 0 : index
    %c0_65 = arith.constant 0 : index
    %159 = vector.load %arg5[%c0_64, %c0_65] : memref<8x128xf32, #tpu.memory_space<vmem>>, vector<8x128xf32>
    tpu.vector_store %arg5[%c0_64, %c0_65], %149 {strides = array<i32>} : memref<8x128xf32, #tpu.memory_space<vmem>>, vector<8x128xf32>,
    %c0_66 = arith.constant 0 : index
    %c0_67 = arith.constant 0 : index
    %160 = vector.load %arg6[%c0_66, %c0_67] : memref<8x128xf32, #tpu.memory_space<vmem>>, vector<8x128xf32>
    tpu.vector_store %arg6[%c0_66, %c0_67], %145 {strides = array<i32>} : memref<8x128xf32, #tpu.memory_space<vmem>>, vector<8x128xf32>,
    %c0_68 = arith.constant 0 : index
    %c0_69 = arith.constant 0 : index
    %161 = vector.load %arg7[%c0_68, %c0_69] : memref<8x128xf32, #tpu.memory_space<vmem>>, vector<8x128xf32>
    tpu.vector_store %arg7[%c0_68, %c0_69], %158 {strides = array<i32>} : memref<8x128xf32, #tpu.memory_space<vmem>>, vector<8x128xf32>,
    return
  }
  func.func @transform_0(%arg0: i32, %arg1: i32) -> (i32, i32, i32) {
    %c0_i32 = arith.constant 0 : i32
    %c0_i32_0 = arith.constant 0 : i32
    return %arg1, %c0_i32, %arg0 : i32, i32, i32
  }
  func.func @transform_1(%arg0: i32, %arg1: i32) -> (i32, i32) {
    %c0_i32 = arith.constant 0 : i32
    %c0_i32_0 = arith.constant 0 : i32
    return %c0_i32, %arg0 : i32, i32
  }
  func.func @transform_2(%arg0: i32, %arg1: i32) -> (i32, i32, i32) {
    %c0_i32 = arith.constant 0 : i32
    %c0_i32_0 = arith.constant 0 : i32
    return %arg1, %c0_i32, %arg0 : i32, i32, i32
  }
}

</mosaic_0001>

<llo_original>
// kernel: tpu_custom_call.1
$region0: #{tpu_custom_call.1}
  #allocation0 [shape = 'u32[]', space=smem, size = 0x4, offset = 0x4, fixed_abs, tag = 'smem constant byte address 0x4 - core index']
  #allocation1 [shape = 'u32[144,128]{1,0:T(1,128)}', space=vmem, size = 0x12000, scoped, tag = 'internal scratch']
  #allocation2 [shape = 'f32[8,128]{1,0:T(8,128)}', space=vmem, size = 0x1000, scoped, tag = 'scratch operand']
  #allocation3 [shape = 'f32[8,128]{1,0:T(8,128)}', space=vmem, size = 0x1000, scoped, tag = 'scratch operand']
  #allocation4 [shape = 'f32[8,128]{1,0:T(8,128)}', space=vmem, size = 0x1000, scoped, tag = 'scratch operand']
  %s0 = inlined_call_operand.hbm [shape: f32[8,8,128], index: 0, kind: input, shape index: {}]
  %s1 = inlined_call_operand.hbm [shape: f32[8,128], index: 1, kind: input, shape index: {}]
  %s2 = inlined_call_operand.hbm [shape: f32[8,8,128], index: 2, kind: output, shape index: {}]
  %s3 = sld [smem:[#allocation0]]
  $region30: #{tpu_custom_call.1} parent=0
    _
  %s5 = ssub.s32 1, %s3
  %s6 = scalar_select 0, %s5, %s3
  $region1: #{tpu_custom_call.1} parent=0
    #allocation5 [shape = 'u8[32768]{0}', space=vmem, size = 0x8000, scoped, tag = 'input window, operand 0, single buffered']
    #allocation6 [shape = 's32[1]{0}', space=sflag, size = 0x4, scoped, tag = 'scoped memory for tpu_custom_call.1']
    #allocation7 [shape = 's32[1]{0}', space=sflag, size = 0x4, scoped, tag = 'scoped memory for tpu_custom_call.1']
    #allocation8 [shape = 'u8[4096]{0}', space=vmem, size = 0x1000, scoped, tag = 'input window, operand 1, single buffered']
    #allocation9 [shape = 's32[1]{0}', space=sflag, size = 0x4, scoped, tag = 'scoped memory for tpu_custom_call.1']
    #allocation10 [shape = 'u8[32768]{0}', space=vmem, size = 0x8000, scoped, tag = 'output window, operand 0, single buffered']
    %7 = vsyncpa [#allocation6], 0
    %8 = vsyncpa [#allocation9], 0
    %9 = vsyncpa [#allocation7], 0
    // Predicated region
    $region2: #{tpu_custom_call.1} parent=1 // pred_check
      _
    $region3: #{tpu_custom_call.1} parent=1 // pred_check_branch
      %11 = sbr.rel (0) target = $region5
    $region4: #{tpu_custom_call.1} parent=1 // pred_region
      %s13 = ssub.s32 1024, 1024
      %14 = vsyncadd [#allocation6], %s13
      %s15 = sshll.u32 [#allocation5], 4
      %s16 = int_to_ptr.vmem [resolvable:$true] %s15
      %21 = dma.hbm_to_vmem [thread:$0]  %s0, 1024, %s16, [#allocation6], 128, 128, 8
    $region5: #{tpu_custom_call.1} parent=1 // pred_fallthru
      _
    // Predicated region
    $region6: #{tpu_custom_call.1} parent=1 // pred_check
      _
    $region7: #{tpu_custom_call.1} parent=1 // pred_check_branch
      %23 = sbr.rel (0) target = $region9
    $region8: #{tpu_custom_call.1} parent=1 // pred_region
      %s25 = ssub.s32 128, 128
      %26 = vsyncadd [#allocation9], %s25
      %s28 = sshll.u32 [#allocation8], 4
      %s29 = int_to_ptr.vmem [resolvable:$true] %s28
      %31 = dma.hbm_to_vmem [thread:$0]  %s1, 128, %s29, [#allocation9]
    $region9: #{tpu_custom_call.1} parent=1 // pred_fallthru
      _
    // Predicated region
    $region10: #{tpu_custom_call.1} parent=1 // pred_check
      _
    $region11: #{tpu_custom_call.1} parent=1 // pred_check_branch
      %33 = sbr.rel (0) target = $region13
    $region12: #{tpu_custom_call.1} parent=1 // pred_region
      %34 = dma.done [#allocation6], 1024
    $region13: #{tpu_custom_call.1} parent=1 // pred_fallthru
      _
    // Predicated region
    $region14: #{tpu_custom_call.1} parent=1 // pred_check
      _
    $region15: #{tpu_custom_call.1} parent=1 // pred_check_branch
      %36 = sbr.rel (0) target = $region17
    $region16: #{tpu_custom_call.1} parent=1 // pred_region
      %37 = dma.done [#allocation9], 128
    $region17: #{tpu_custom_call.1} parent=1 // pred_fallthru
      _
    %p38 = scmp.eq.s32.totalorder 0, 0
    // Predicated region
    $region18: #{tpu_custom_call.1} parent=1 // pred_check
      %p39 = pneg %p38
    $region19: #{tpu_custom_call.1} parent=1 // pred_check_branch
      %41 = sbr.rel (%p39) target = $region21
    $region20: #{tpu_custom_call.1} parent=1 // pred_region
      %42 = vst [vmem:[#allocation2] sm:$0xff] 0.0
      %43 = vst [vmem:[#allocation3] sm:$0xff] 0.0
      %44 = vst [vmem:[#allocation4] sm:$0xff] 0.0
    $region21: #{tpu_custom_call.1} parent=1 // pred_fallthru
      _
    %v45 = vld [vmem:[#allocation8] sm:$0xff]
    %v46 = vld [vmem:[#allocation2] sm:$0xff]
    %v47 = vld [vmem:[#allocation3] sm:$0xff]
    %v48 = vld [vmem:[#allocation4] sm:$0xff]
    %v49 = vld [vmem:[#allocation5] sm:$0xff]
    %v50 = vmul.f32 %v47, 0.75
    %v51 = vadd.f32 %v50, %v49
    %v52 = vmul.f32 %v46, 0.65
    %v53 = vadd.f32 %v52, %v51
    %v54 = vsub.f32 %v53, %v48
    %vm55 = vcmp.gt.f32.partialorder %v54, %v45
    %v56 = vsel %vm55, 1, 0
    %v57 = vcvt.s32.f32 %v56
    %58 = vst [vmem:[#allocation10] sm:$0xff] %v57
    %v59 = vsel %vm55, %v45, 0.0
    %s60 = scalar_lea.vmem [#allocation5], 8
    %v61 = vld [vmem:[%s60] sm:$0xff]
    %v62 = vmul.f32 %v51, 0.75
    %v63 = vadd.f32 %v62, %v61
    %v64 = vmul.f32 %v54, 0.65
    %v65 = vadd.f32 %v64, %v63
    %v66 = vsub.f32 %v65, %v59
    %vm67 = vcmp.gt.f32.partialorder %v66, %v45
    %v68 = vsel %vm67, 1, 0
    %v69 = vcvt.s32.f32 %v68
    %s70 = scalar_lea.vmem [#allocation10], 8
    %71 = vst [vmem:[%s70] sm:$0xff] %v69
    %v72 = vsel %vm67, %v45, 0.0
    %s73 = scalar_lea.vmem [#allocation5], 16
    %v74 = vld [vmem:[%s73] sm:$0xff]
    %v75 = vmul.f32 %v63, 0.75
    %v76 = vadd.f32 %v75, %v74
    %v77 = vmul.f32 %v66, 0.65
    %v78 = vadd.f32 %v77, %v76
    %v79 = vsub.f32 %v78, %v72
    %vm80 = vcmp.gt.f32.partialorder %v79, %v45
    %v81 = vsel %vm80, 1, 0
    %v82 = vcvt.s32.f32 %v81
    %s83 = scalar_lea.vmem [#allocation10], 16
    %84 = vst [vmem:[%s83] sm:$0xff] %v82
    %v85 = vsel %vm80, %v45, 0.0
    %s86 = scalar_lea.vmem [#allocation5], 24
    %v87 = vld [vmem:[%s86] sm:$0xff]
    %v88 = vmul.f32 %v76, 0.75
    %v89 = vadd.f32 %v88, %v87
    %v90 = vmul.f32 %v79, 0.65
    %v91 = vadd.f32 %v90, %v89
    %v92 = vsub.f32 %v91, %v85
    %vm93 = vcmp.gt.f32.partialorder %v92, %v45
    %v94 = vsel %vm93, 1, 0
    %v95 = vcvt.s32.f32 %v94
    %s96 = scalar_lea.vmem [#allocation10], 24
    %97 = vst [vmem:[%s96] sm:$0xff] %v95
    %v98 = vsel %vm93, %v45, 0.0
    %s99 = scalar_lea.vmem [#allocation5], 32
    %v100 = vld [vmem:[%s99] sm:$0xff]
    %v101 = vmul.f32 %v89, 0.75
    %v102 = vadd.f32 %v101, %v100
    %v103 = vmul.f32 %v92, 0.65
    %v104 = vadd.f32 %v103, %v102
    %v105 = vsub.f32 %v104, %v98
    %vm106 = vcmp.gt.f32.partialorder %v105, %v45
    %v107 = vsel %vm106, 1, 0
    %v108 = vcvt.s32.f32 %v107
    %s109 = scalar_lea.vmem [#allocation10], 32
    %110 = vst [vmem:[%s109] sm:$0xff] %v108
    %v111 = vsel %vm106, %v45, 0.0
    %s112 = scalar_lea.vmem [#allocation5], 40
    %v113 = vld [vmem:[%s112] sm:$0xff]
    %v114 = vmul.f32 %v102, 0.75
    %v115 = vadd.f32 %v114, %v113
    %v116 = vmul.f32 %v105, 0.65
    %v117 = vadd.f32 %v116, %v115
    %v118 = vsub.f32 %v117, %v111
    %vm119 = vcmp.gt.f32.partialorder %v118, %v45
    %v120 = vsel %vm119, 1, 0
    %v121 = vcvt.s32.f32 %v120
    %s122 = scalar_lea.vmem [#allocation10], 40
    %123 = vst [vmem:[%s122] sm:$0xff] %v121
    %v124 = vsel %vm119, %v45, 0.0
    %s125 = scalar_lea.vmem [#allocation5], 48
    %v126 = vld [vmem:[%s125] sm:$0xff]
    %v127 = vmul.f32 %v115, 0.75
    %v128 = vadd.f32 %v127, %v126
    %v129 = vmul.f32 %v118, 0.65
    %v130 = vadd.f32 %v129, %v128
    %v131 = vsub.f32 %v130, %v124
    %vm132 = vcmp.gt.f32.partialorder %v131, %v45
    %v133 = vsel %vm132, 1, 0
    %v134 = vcvt.s32.f32 %v133
    %s135 = scalar_lea.vmem [#allocation10], 48
    %136 = vst [vmem:[%s135] sm:$0xff] %v134
    %v137 = vsel %vm132, %v45, 0.0
    %s138 = scalar_lea.vmem [#allocation5], 56
    %v139 = vld [vmem:[%s138] sm:$0xff]
    %v140 = vmul.f32 %v128, 0.75
    %v141 = vadd.f32 %v140, %v139
    %v142 = vmul.f32 %v131, 0.65
    %v143 = vadd.f32 %v142, %v141
    %v144 = vsub.f32 %v143, %v137
    %vm145 = vcmp.gt.f32.partialorder %v144, %v45
    %v146 = vsel %vm145, 1, 0
    %v147 = vcvt.s32.f32 %v146
    %s148 = scalar_lea.vmem [#allocation10], 56
    %149 = vst [vmem:[%s148] sm:$0xff] %v147
    %v150 = vsel %vm145, %v45, 0.0
    %151 = vst [vmem:[#allocation2] sm:$0xff] %v144
    %152 = vst [vmem:[#allocation3] sm:$0xff] %v141
    %153 = vst [vmem:[#allocation4] sm:$0xff] %v150
    // Predicated region
    $region22: #{tpu_custom_call.1} parent=1 // pred_check
      _
    $region23: #{tpu_custom_call.1} parent=1 // pred_check_branch
      %155 = sbr.rel (0) target = $region25
    $region24: #{tpu_custom_call.1} parent=1 // pred_region
      %s157 = ssub.s32 1024, 1024
      %158 = vsyncadd [#allocation7], %s157
      %s159 = sshll.u32 [#allocation10], 4
      %s160 = int_to_ptr.vmem [resolvable:$true] %s159
      %165 = dma.vmem_to_hbm [thread:$0]  %s160, 1024, %s2, [#allocation7], 128, 128, 8
    $region25: #{tpu_custom_call.1} parent=1 // pred_fallthru
      _
    // Predicated region
    $region26: #{tpu_custom_call.1} parent=1 // pred_check
      _
    $region27: #{tpu_custom_call.1} parent=1 // pred_check_branch
      %167 = sbr.rel (0) target = $region29
    $region28: #{tpu_custom_call.1} parent=1 // pred_region
      %168 = dma.done [#allocation7], 1024
    $region29: #{tpu_custom_call.1} parent=1 // pred_fallthru
      _
    %169 = vsyncpa [#allocation6], 1
    %170 = vsyncpa [#allocation9], 1
    %171 = vsyncpa [#allocation7], 1

</llo_original>
